<compile_context>
chip_gen: v5e
topology: v5e:2x2
jax: 0.10.0
libtpu: 0.0.40
codegen_flags: <defaults>
</compile_context>

<pallas_src>
import functools
import math

import jax
import jax.numpy as jnp
import numpy as np
from jax import lax
from jax.experimental import pallas as pl
from jax.experimental.pallas import tpu as pltpu

_SQRT_HALF = 1.0 / math.sqrt(2.0)


def _erf(x):
    # Abramowitz & Stegun 7.1.26 polynomial erf (f32-level accuracy).
    a1, a2, a3, a4, a5 = (0.254829592, -0.284496736, 1.421413741,
                          -1.453152027, 1.061405429)
    p = 0.3275911
    z = jnp.abs(x)
    # EUP approximate reciprocal (frees VALU slots); error is well inside the
    # kernel tolerance.
    t = pl.reciprocal(1.0 + p * z, approx=True)
    poly = ((((a5 * t + a4) * t + a3) * t + a2) * t + a1) * t
    y = 1.0 - poly * jnp.exp(-z * z)
    return jnp.where(x < 0.0, -y, y)


def _gelu_exact(u):
    # GELU math kept in f32; only matmul operands are cast to the weight dtype.
    return 0.5 * u * (1.0 + _erf(u * _SQRT_HALF))


def _rmsnorm(x_ref, g_ref, eps):
    x = x_ref[...].astype(jnp.float32)                          # (tm, D)
    ms = jnp.mean(x * x, axis=-1, keepdims=True)                # (tm, 1)
    y = x * lax.rsqrt(ms + eps) * g_ref[...].astype(jnp.float32)
    return x, y


def _resident_kernel(x_ref, g_ref, w1_ref, w2_ref, o_ref, *, eps):
    """Whole-W1/W2-resident path (weights loaded once, constant index maps)."""
    x, y = _rmsnorm(x_ref, g_ref, eps)
    # Native-dtype (e.g. bf16) MXU operands, f32 accumulation.
    h = jnp.dot(y.astype(w1_ref.dtype), w1_ref[...],
                preferred_element_type=jnp.float32)             # (tm, F)
    h = _gelu_exact(h)
    z = jnp.dot(h.astype(w2_ref.dtype), w2_ref[...],
                preferred_element_type=jnp.float32)             # (tm, D)
    o_ref[...] = (x + z).astype(o_ref.dtype)


def _ff_tiled_kernel(x_ref, g_ref, w1_ref, w2_ref, o_ref, y_ref, acc_ref, *, eps):
    """d_ff-tiled streaming path (v7x / very large FFN): accumulate over F tiles."""
    k = pl.program_id(1)

    @pl.when(k == 0)
    def _():
        _, y = _rmsnorm(x_ref, g_ref, eps)
        y_ref[...] = y.astype(y_ref.dtype)
        acc_ref[...] = jnp.zeros_like(acc_ref)

    h = jnp.dot(y_ref[...], w1_ref[...], preferred_element_type=jnp.float32)
    h = _gelu_exact(h)
    acc_ref[...] += jnp.dot(h.astype(w2_ref.dtype), w2_ref[...],
                            preferred_element_type=jnp.float32)

    @pl.when(k == pl.num_programs(1) - 1)
    def _():
        o_ref[...] = (x_ref[...].astype(jnp.float32)
                      + acc_ref[...]).astype(o_ref.dtype)


def _round_up(a, b):
    return -(-a // b) * b


def resnet_block(x, ln_weight, w1, w2, *, eps=1e-5, row_tile=256, ff_tile=512,
                 residency_budget_bytes=48 * (1 << 20), force_ff_tiling=False):
    """Fused ResNetBlock forward.

    x:         (..., d_model)
    ln_weight: (d_model,)               RMSNorm gain
    w1:        (d_model, d_ff)          == nn.Linear(d_model, d_ff).weight.T
    w2:        (d_ff, d_model)          == nn.Linear(d_ff, d_model).weight.T
    """
    orig_shape = x.shape
    d_model = orig_shape[-1]
    d_ff = w1.shape[1]
    assert ln_weight.shape == (d_model,)
    assert w1.shape == (d_model, d_ff) and w2.shape == (d_ff, d_model)

    xm = x.reshape(-1, d_model)
    m = xm.shape[0]

    # Row-tile rounding: 8 rows for 4-byte dtypes, 16 for bf16 (sublane packing).
    a_item = x.dtype.itemsize
    w_item = w1.dtype.itemsize
    pack = max(8, 32 // max(1, a_item))
    row_tile = _round_up(row_tile, pack)
    tm = _round_up(m, pack) if m <= row_tile else row_tile
    mp = _round_up(m, tm)
    if mp != m:
        # Zero rows stay zero through RMSNorm/FFN; sliced off below.
        xm = jnp.pad(xm, ((0, mp - m), (0, 0)))

    g2 = ln_weight.reshape(1, d_model)
    weight_bytes = (w1.size + w2.size) * w_item + g2.size * g2.dtype.itemsize

    # Per-row-tile working set for the resident layout (single-buffered weights,
    # double-buffered activations, f32 intermediates).
    resident_tile_bytes = (
        2 * tm * d_model * a_item            # x (double-buffered)
        + 2 * tm * d_model * a_item          # out (double-buffered)
        + tm * d_ff * (4 + w_item)           # h f32 + h cast for 2nd matmul
        + 3 * tm * d_model * 4               # x/y f32 temporaries
    )
    use_ff_tiling = force_ff_tiling or (
        weight_bytes + resident_tile_bytes > residency_budget_bytes)

    cost = pl.CostEstimate(
        flops=4 * mp * d_model * d_ff,
        transcendentals=mp * d_ff,
        bytes_accessed=2 * mp * d_model * a_item + weight_bytes,
    )

    def _const_spec(shape, index_map, mode):
        if mode is None:
            return pl.BlockSpec(shape, index_map)
        return pl.BlockSpec(shape, index_map, pipeline_mode=mode)

    def _call(const_mode, w_bufs):
        if not use_ff_tiling:
            grid = (mp // tm,)
            vmem_needed = w_bufs * weight_bytes + resident_tile_bytes
            in_specs = [
                pl.BlockSpec((tm, d_model), lambda i: (i, 0)),                  # activations
                _const_spec((1, d_model), lambda i: (0, 0), const_mode),        # gain (resident)
                _const_spec((d_model, d_ff), lambda i: (0, 0), const_mode),     # W1 (resident)
                _const_spec((d_ff, d_model), lambda i: (0, 0), const_mode),     # W2 (resident)
            ]
            out_specs = pl.BlockSpec((tm, d_model), lambda i: (i, 0))
            scratch = []
            kern = functools.partial(_resident_kernel, eps=eps)
            dims = ("parallel",)
        else:
            # d_ff-tiled streaming layout: W tiles double-buffered (overlap DMA
            # with MXU), f32 accumulator in scratch.
            tf = min(ff_tile, d_ff)
            tf = max(128, (tf // 128) * 128)
            while d_ff % tf != 0 and tf > 128:
                tf -= 128
            if d_ff % tf != 0:
                tf = d_ff                       # ragged d_ff -> single full-extent F step
            grid = (mp // tm, d_ff // tf)
            vmem_needed = (
                2 * 2 * d_model * tf * w_item          # W1 + W2 tiles, double-buffered
                + 2 * d_model * g2.dtype.itemsize
                + 4 * tm * d_model * a_item            # x/out double-buffered
                + tm * d_model * (w_item + 4)          # y scratch + f32 accumulator
                + tm * tf * (4 + w_item)               # h f32 + cast
                + 3 * tm * d_model * 4
            )
            in_specs = [
                pl.BlockSpec((tm, d_model), lambda i, k: (i, 0)),
                _const_spec((1, d_model), lambda i, k: (0, 0), const_mode),
                pl.BlockSpec((d_model, tf), lambda i, k: (0, k)),
                pl.BlockSpec((tf, d_model), lambda i, k: (k, 0)),
            ]
            out_specs = pl.BlockSpec((tm, d_model), lambda i, k: (i, 0))
            scratch = [pltpu.VMEM((tm, d_model), w1.dtype),       # y (weight dtype)
                       pltpu.VMEM((tm, d_model), jnp.float32)]    # accumulator
            kern = functools.partial(_ff_tiled_kernel, eps=eps)
            dims = ("parallel", "arbitrary")

        vmem_limit = min(max(int(vmem_needed * 1.25) + (4 << 20), 16 << 20), 64 << 20)
        return pl.pallas_call(
            kern,
            out_shape=jax.ShapeDtypeStruct((mp, d_model), x.dtype),
            grid_spec=pltpu.PrefetchScalarGridSpec(
                num_scalar_prefetch=0,
                grid=grid,
                in_specs=in_specs,
                out_specs=out_specs,
                scratch_shapes=scratch,
            ),
            compiler_params=pltpu.CompilerParams(
                dimension_semantics=dims,
                vmem_limit_bytes=vmem_limit,
            ),
            cost_estimate=cost,
        )(xm, g2, w1, w2)

    try:
        # Single-buffer the grid-constant blocks (gain / resident weights).
        out = _call(pl.Buffered(1), 1)
    except Exception:
        # Fallback for jax versions without Buffered(1) support: default buffering.
        out = _call(None, 2)

    if mp != m:
        out = out[:m]
    return out.reshape(orig_shape)


def _reference(x, ln_weight, w1, w2, eps=1e-5):
    """Pure-JAX reference matching the PyTorch module (eval mode)."""
    orig_shape = x.shape
    d_model = orig_shape[-1]
    x32 = x.reshape(-1, d_model).astype(jnp.float32)
    rms = jnp.sqrt(jnp.mean(x32 * x32, axis=-1, keepdims=True) + eps)
    y = x32 / rms * ln_weight
    h = jnp.dot(y, w1, precision=jax.lax.Precision.HIGHEST)
    h = 0.5 * h * (1.0 + jax.scipy.special.erf(h / np.sqrt(2.0)))
    z = jnp.dot(h, w2, precision=jax.lax.Precision.HIGHEST)
    return (x32 + z).astype(x.dtype).reshape(orig_shape)


if __name__ == "__main__":
    eps = 1e-5
    key = jax.random.PRNGKey(0)

    # --- Test 1: f32, resident-weight path ---------------------------------
    B, S, d_model, d_ff = 2, 8, 32, 128
    k_x, k_g, k_w1, k_w2 = jax.random.split(key, 4)
    x = jax.random.normal(k_x, (B, S, d_model), dtype=jnp.float32)
    ln_weight = 1.0 + 0.1 * jax.random.normal(k_g, (d_model,), dtype=jnp.float32)
    # Weights stored pre-transposed ((in, out)) relative to nn.Linear.weight.
    w1 = 0.05 * jax.random.normal(k_w1, (d_model, d_ff), dtype=jnp.float32)
    w2 = 0.05 * jax.random.normal(k_w2, (d_ff, d_model), dtype=jnp.float32)

    out = jax.block_until_ready(resnet_block(x, ln_weight, w1, w2, eps=eps))
    ref = _reference(x, ln_weight, w1, w2, eps=eps)
    assert out.shape == x.shape
    err = float(jnp.max(jnp.abs(out - ref)))
    assert jnp.allclose(out, ref, rtol=5e-3, atol=5e-3), err

    # --- Test 2: bf16 activations + weights (bf16 MXU operands, f32 accum) --
    xb, gb, w1b, w2b = (a.astype(jnp.bfloat16) for a in (x, ln_weight, w1, w2))
    out_b = jax.block_until_ready(resnet_block(xb, gb, w1b, w2b, eps=eps))
    ref_b = _reference(xb, gb, w1b, w2b, eps=eps)
    assert out_b.shape == xb.shape
    assert jnp.allclose(out_b.astype(jnp.float32), ref_b.astype(jnp.float32),
                        rtol=5e-2, atol=5e-2)

    # --- Test 3: d_ff-tiled accumulator path (v7x-style streaming), forced --
    B2, S2, dm2, df2 = 2, 24, 64, 256
    k_x2, k_w12, k_w22 = jax.random.split(jax.random.PRNGKey(1), 3)
    x2 = jax.random.normal(k_x2, (B2, S2, dm2), dtype=jnp.float32)
    g2v = jnp.ones((dm2,), dtype=jnp.float32)
    w12 = 0.05 * jax.random.normal(k_w12, (dm2, df2), dtype=jnp.float32)
    w22 = 0.05 * jax.random.normal(k_w22, (df2, dm2), dtype=jnp.float32)
    out2 = jax.block_until_ready(
        resnet_block(x2, g2v, w12, w22, eps=eps, row_tile=16, ff_tile=128,
                     force_ff_tiling=True))
    ref2 = _reference(x2, g2v, w12, w22, eps=eps)
    err2 = float(jnp.max(jnp.abs(out2 - ref2)))
    assert jnp.allclose(out2, ref2, rtol=5e-3, atol=5e-3), err2

    print("KERNEL_OK")
</pallas_src>

<mosaic_0001>
module attributes {stable_mosaic.version = 11 : i64} {
  func.func @_resident_kernel(%arg0: i32, %arg1: memref<16x32xf32, #tpu.memory_space<vmem>>, %arg2: memref<1x32xf32, #tpu.memory_space<vmem>>, %arg3: memref<32x128xf32, #tpu.memory_space<vmem>>, %arg4: memref<128x32xf32, #tpu.memory_space<vmem>>, %arg5: memref<16x32xf32, #tpu.memory_space<vmem>>) attributes {dimension_semantics = [#tpu.dimension_semantics<parallel>], iteration_bounds = array<i64: 1>, scalar_prefetch = 0 : i64, scratch_operands = 0 : i64, tpu.core_type = #tpu.core_type<tc>, window_params = [{transform_indices = @transform_0, window_bounds = array<i64: 16, 32>}, {pipeline_mode = #tpu.pipeline_mode<synchronous>, transform_indices = @transform_1, window_bounds = array<i64: 1, 32>}, {pipeline_mode = #tpu.pipeline_mode<synchronous>, transform_indices = @transform_2, window_bounds = array<i64: 32, 128>}, {pipeline_mode = #tpu.pipeline_mode<synchronous>, transform_indices = @transform_3, window_bounds = array<i64: 128, 32>}, {transform_indices = @transform_4, window_bounds = array<i64: 16, 32>}]} {
    %c0 = arith.constant 0 : index
    %c0_0 = arith.constant 0 : index
    %0 = vector.load %arg1[%c0, %c0_0] : memref<16x32xf32, #tpu.memory_space<vmem>>, vector<16x32xf32>
    %1 = arith.mulf %0, %0 : vector<16x32xf32>
    %cst = arith.constant dense<0.000000e+00> : vector<16xf32>
    %2 = vector.multi_reduction <add>, %1, %cst [1] : vector<16x32xf32> to vector<16xf32>
    %3 = vector.shape_cast %2 : vector<16xf32> to vector<16x1xf32>
    %cst_1 = arith.constant 3.200000e+01 : f32
    %4 = vector.broadcast %cst_1 : f32 to vector<16x1xf32>
    %5 = arith.divf %3, %4 : vector<16x1xf32>
    %cst_2 = arith.constant 9.99999974E-6 : f32
    %6 = vector.broadcast %cst_2 : f32 to vector<16x1xf32>
    %7 = arith.addf %5, %6 : vector<16x1xf32>
    %8 = math.rsqrt %7 : vector<16x1xf32>
    %9 = vector.broadcast %8 : vector<16x1xf32> to vector<16x32xf32>
    %10 = arith.mulf %0, %9 : vector<16x32xf32>
    %c0_3 = arith.constant 0 : index
    %c0_4 = arith.constant 0 : index
    %11 = vector.load %arg2[%c0_3, %c0_4] : memref<1x32xf32, #tpu.memory_space<vmem>>, vector<1x32xf32>
    %12 = vector.broadcast %11 : vector<1x32xf32> to vector<16x32xf32>
    %13 = arith.mulf %10, %12 : vector<16x32xf32>
    %c0_5 = arith.constant 0 : index
    %c0_6 = arith.constant 0 : index
    %14 = vector.load %arg3[%c0_5, %c0_6] : memref<32x128xf32, #tpu.memory_space<vmem>>, vector<32x128xf32>
    %cst_7 = arith.constant dense<0.000000e+00> : vector<16x128xf32>
    %15 = tpu.matmul %13, %14, %cst_7 {dimension_numbers = #tpu.dot_dimension_numbers<[1], [0], [0], [1], [0, 0, 1, 1], [], []>} : vector<16x32xf32>, vector<32x128xf32>, vector<16x128xf32> -> vector<16x128xf32>
    %cst_8 = arith.constant 5.000000e-01 : f32
    %16 = vector.broadcast %cst_8 : f32 to vector<16x128xf32>
    %17 = arith.mulf %16, %15 : vector<16x128xf32>
    %cst_9 = arith.constant 0.707106769 : f32
    %18 = vector.broadcast %cst_9 : f32 to vector<16x128xf32>
    %19 = arith.mulf %15, %18 : vector<16x128xf32>
    %20 = math.absf %19 : vector<16x128xf32>
    %cst_10 = arith.constant 0.327591091 : f32
    %21 = vector.broadcast %cst_10 : f32 to vector<16x128xf32>
    %22 = arith.mulf %21, %20 : vector<16x128xf32>
    %cst_11 = arith.constant 1.000000e+00 : f32
    %23 = vector.broadcast %cst_11 : f32 to vector<16x128xf32>
    %24 = arith.addf %23, %22 : vector<16x128xf32>
    %25 = tpu.reciprocal %24 {approx = true} : vector<16x128xf32> -> vector<16x128xf32>
    %cst_12 = arith.constant 1.06140542 : f32
    %26 = vector.broadcast %cst_12 : f32 to vector<16x128xf32>
    %27 = arith.mulf %26, %25 : vector<16x128xf32>
    %cst_13 = arith.constant -1.45315206 : f32
    %28 = vector.broadcast %cst_13 : f32 to vector<16x128xf32>
    %29 = arith.addf %27, %28 : vector<16x128xf32>
    %30 = arith.mulf %29, %25 : vector<16x128xf32>
    %cst_14 = arith.constant 1.42141378 : f32
    %31 = vector.broadcast %cst_14 : f32 to vector<16x128xf32>
    %32 = arith.addf %30, %31 : vector<16x128xf32>
    %33 = arith.mulf %32, %25 : vector<16x128xf32>
    %cst_15 = arith.constant -0.284496725 : f32
    %34 = vector.broadcast %cst_15 : f32 to vector<16x128xf32>
    %35 = arith.addf %33, %34 : vector<16x128xf32>
    %36 = arith.mulf %35, %25 : vector<16x128xf32>
    %cst_16 = arith.constant 0.254829586 : f32
    %37 = vector.broadcast %cst_16 : f32 to vector<16x128xf32>
    %38 = arith.addf %36, %37 : vector<16x128xf32>
    %39 = arith.mulf %38, %25 : vector<16x128xf32>
    %cst_17 = arith.constant 0.000000e+00 : f32
    %40 = vector.broadcast %cst_17 : f32 to vector<16x128xf32>
    %41 = arith.subf %40, %20 : vector<16x128xf32>
    %42 = arith.mulf %41, %20 : vector<16x128xf32>
    %43 = math.exp %42 : vector<16x128xf32>
    %44 = arith.mulf %39, %43 : vector<16x128xf32>
    %cst_18 = arith.constant 1.000000e+00 : f32
    %45 = vector.broadcast %cst_18 : f32 to vector<16x128xf32>
    %46 = arith.subf %45, %44 : vector<16x128xf32>
    %cst_19 = arith.constant 0.000000e+00 : f32
    %47 = vector.broadcast %cst_19 : f32 to vector<16x128xf32>
    %48 = arith.cmpf olt, %19, %47 : vector<16x128xf32>
    %cst_20 = arith.constant 0.000000e+00 : f32
    %49 = vector.broadcast %cst_20 : f32 to vector<16x128xf32>
    %50 = arith.subf %49, %46 : vector<16x128xf32>
    %51 = arith.select %48, %50, %46 : vector<16x128xi1>, vector<16x128xf32>
    %cst_21 = arith.constant 1.000000e+00 : f32
    %52 = vector.broadcast %cst_21 : f32 to vector<16x128xf32>
    %53 = arith.addf %52, %51 : vector<16x128xf32>
    %54 = arith.mulf %17, %53 : vector<16x128xf32>
    %c0_22 = arith.constant 0 : index
    %c0_23 = arith.constant 0 : index
    %55 = vector.load %arg4[%c0_22, %c0_23] : memref<128x32xf32, #tpu.memory_space<vmem>>, vector<128x32xf32>
    %cst_24 = arith.constant dense<0.000000e+00> : vector<16x32xf32>
    %56 = tpu.matmul %54, %55, %cst_24 {dimension_numbers = #tpu.dot_dimension_numbers<[1], [0], [0], [1], [0, 0, 1, 1], [], []>} : vector<16x128xf32>, vector<128x32xf32>, vector<16x32xf32> -> vector<16x32xf32>
    %57 = arith.addf %0, %56 : vector<16x32xf32>
    %c0_25 = arith.constant 0 : index
    %c0_26 = arith.constant 0 : index
    %58 = vector.load %arg5[%c0_25, %c0_26] : memref<16x32xf32, #tpu.memory_space<vmem>>, vector<16x32xf32>
    tpu.vector_store %arg5[%c0_25, %c0_26], %57 {strides = array<i32>} : memref<16x32xf32, #tpu.memory_space<vmem>>, vector<16x32xf32>,
    return
  }
  func.func @transform_0(%arg0: i32) -> (i32, i32) {
    %c0_i32 = arith.constant 0 : i32
    %c0_i32_0 = arith.constant 0 : i32
    return %arg0, %c0_i32 : i32, i32
  }
  func.func @transform_1(%arg0: i32) -> (i32, i32) {
    %c0_i32 = arith.constant 0 : i32
    %c0_i32_0 = arith.constant 0 : i32
    %c0_i32_1 = arith.constant 0 : i32
    return %c0_i32, %c0_i32_0 : i32, i32
  }
  func.func @transform_2(%arg0: i32) -> (i32, i32) {
    %c0_i32 = arith.constant 0 : i32
    %c0_i32_0 = arith.constant 0 : i32
    %c0_i32_1 = arith.constant 0 : i32
    return %c0_i32, %c0_i32_0 : i32, i32
  }
  func.func @transform_3(%arg0: i32) -> (i32, i32) {
    %c0_i32 = arith.constant 0 : i32
    %c0_i32_0 = arith.constant 0 : i32
    %c0_i32_1 = arith.constant 0 : i32
    return %c0_i32, %c0_i32_0 : i32, i32
  }
  func.func @transform_4(%arg0: i32) -> (i32, i32) {
    %c0_i32 = arith.constant 0 : i32
    %c0_i32_0 = arith.constant 0 : i32
    return %arg0, %c0_i32 : i32, i32
  }
}

module attributes {stable_mosaic.version = 11 : i64} {
  func.func @_resident_kernel(%arg0: i32, %arg1: memref<16x32xf32, #tpu.memory_space<vmem>>, %arg2: memref<1x32xf32, #tpu.memory_space<vmem>>, %arg3: memref<32x128xf32, #tpu.memory_space<vmem>>, %arg4: memref<128x32xf32, #tpu.memory_space<vmem>>, %arg5: memref<16x32xf32, #tpu.memory_space<vmem>>) attributes {dimension_semantics = [#tpu.dimension_semantics<parallel>], iteration_bounds = array<i64: 1>, scalar_prefetch = 0 : i64, scratch_operands = 0 : i64, tpu.core_type = #tpu.core_type<tc>, window_params = [{transform_indices = @transform_0, window_bounds = array<i64: 16, 32>}, {pipeline_mode = #tpu.pipeline_mode<synchronous>, transform_indices = @transform_1, window_bounds = array<i64: 1, 32>}, {pipeline_mode = #tpu.pipeline_mode<synchronous>, transform_indices = @transform_2, window_bounds = array<i64: 32, 128>}, {pipeline_mode = #tpu.pipeline_mode<synchronous>, transform_indices = @transform_3, window_bounds = array<i64: 128, 32>}, {transform_indices = @transform_4, window_bounds = array<i64: 16, 32>}]} {
    %c0 = arith.constant 0 : index
    %c0_0 = arith.constant 0 : index
    %0 = vector.load %arg1[%c0, %c0_0] : memref<16x32xf32, #tpu.memory_space<vmem>>, vector<16x32xf32>
    %1 = arith.mulf %0, %0 : vector<16x32xf32>
    %cst = arith.constant dense<0.000000e+00> : vector<16xf32>
    %2 = vector.multi_reduction <add>, %1, %cst [1] : vector<16x32xf32> to vector<16xf32>
    %3 = vector.shape_cast %2 : vector<16xf32> to vector<16x1xf32>
    %cst_1 = arith.constant 3.200000e+01 : f32
    %4 = vector.broadcast %cst_1 : f32 to vector<16x1xf32>
    %5 = arith.divf %3, %4 : vector<16x1xf32>
    %cst_2 = arith.constant 9.99999974E-6 : f32
    %6 = vector.broadcast %cst_2 : f32 to vector<16x1xf32>
    %7 = arith.addf %5, %6 : vector<16x1xf32>
    %8 = math.rsqrt %7 : vector<16x1xf32>
    %9 = vector.broadcast %8 : vector<16x1xf32> to vector<16x32xf32>
    %10 = arith.mulf %0, %9 : vector<16x32xf32>
    %c0_3 = arith.constant 0 : index
    %c0_4 = arith.constant 0 : index
    %11 = vector.load %arg2[%c0_3, %c0_4] : memref<1x32xf32, #tpu.memory_space<vmem>>, vector<1x32xf32>
    %12 = vector.broadcast %11 : vector<1x32xf32> to vector<16x32xf32>
    %13 = arith.mulf %10, %12 : vector<16x32xf32>
    %c0_5 = arith.constant 0 : index
    %c0_6 = arith.constant 0 : index
    %14 = vector.load %arg3[%c0_5, %c0_6] : memref<32x128xf32, #tpu.memory_space<vmem>>, vector<32x128xf32>
    %cst_7 = arith.constant dense<0.000000e+00> : vector<16x128xf32>
    %15 = tpu.matmul %13, %14, %cst_7 {dimension_numbers = #tpu.dot_dimension_numbers<[1], [0], [0], [1], [0, 0, 1, 1], [], []>} : vector<16x32xf32>, vector<32x128xf32>, vector<16x128xf32> -> vector<16x128xf32>
    %cst_8 = arith.constant 5.000000e-01 : f32
    %16 = vector.broadcast %cst_8 : f32 to vector<16x128xf32>
    %17 = arith.mulf %16, %15 : vector<16x128xf32>
    %cst_9 = arith.constant 0.707106769 : f32
    %18 = vector.broadcast %cst_9 : f32 to vector<16x128xf32>
    %19 = arith.mulf %15, %18 : vector<16x128xf32>
    %20 = math.absf %19 : vector<16x128xf32>
    %cst_10 = arith.constant 0.327591091 : f32
    %21 = vector.broadcast %cst_10 : f32 to vector<16x128xf32>
    %22 = arith.mulf %21, %20 : vector<16x128xf32>
    %cst_11 = arith.constant 1.000000e+00 : f32
    %23 = vector.broadcast %cst_11 : f32 to vector<16x128xf32>
    %24 = arith.addf %23, %22 : vector<16x128xf32>
    %25 = tpu.reciprocal %24 {approx = true} : vector<16x128xf32> -> vector<16x128xf32>
    %cst_12 = arith.constant 1.06140542 : f32
    %26 = vector.broadcast %cst_12 : f32 to vector<16x128xf32>
    %27 = arith.mulf %26, %25 : vector<16x128xf32>
    %cst_13 = arith.constant -1.45315206 : f32
    %28 = vector.broadcast %cst_13 : f32 to vector<16x128xf32>
    %29 = arith.addf %27, %28 : vector<16x128xf32>
    %30 = arith.mulf %29, %25 : vector<16x128xf32>
    %cst_14 = arith.constant 1.42141378 : f32
    %31 = vector.broadcast %cst_14 : f32 to vector<16x128xf32>
    %32 = arith.addf %30, %31 : vector<16x128xf32>
    %33 = arith.mulf %32, %25 : vector<16x128xf32>
    %cst_15 = arith.constant -0.284496725 : f32
    %34 = vector.broadcast %cst_15 : f32 to vector<16x128xf32>
    %35 = arith.addf %33, %34 : vector<16x128xf32>
    %36 = arith.mulf %35, %25 : vector<16x128xf32>
    %cst_16 = arith.constant 0.254829586 : f32
    %37 = vector.broadcast %cst_16 : f32 to vector<16x128xf32>
    %38 = arith.addf %36, %37 : vector<16x128xf32>
    %39 = arith.mulf %38, %25 : vector<16x128xf32>
    %cst_17 = arith.constant 0.000000e+00 : f32
    %40 = vector.broadcast %cst_17 : f32 to vector<16x128xf32>
    %41 = arith.subf %40, %20 : vector<16x128xf32>
    %42 = arith.mulf %41, %20 : vector<16x128xf32>
    %43 = math.exp %42 : vector<16x128xf32>
    %44 = arith.mulf %39, %43 : vector<16x128xf32>
    %cst_18 = arith.constant 1.000000e+00 : f32
    %45 = vector.broadcast %cst_18 : f32 to vector<16x128xf32>
    %46 = arith.subf %45, %44 : vector<16x128xf32>
    %cst_19 = arith.constant 0.000000e+00 : f32
    %47 = vector.broadcast %cst_19 : f32 to vector<16x128xf32>
    %48 = arith.cmpf olt, %19, %47 : vector<16x128xf32>
    %cst_20 = arith.constant 0.000000e+00 : f32
    %49 = vector.broadcast %cst_20 : f32 to vector<16x128xf32>
    %50 = arith.subf %49, %46 : vector<16x128xf32>
    %51 = arith.select %48, %50, %46 : vector<16x128xi1>, vector<16x128xf32>
    %cst_21 = arith.constant 1.000000e+00 : f32
    %52 = vector.broadcast %cst_21 : f32 to vector<16x128xf32>
    %53 = arith.addf %52, %51 : vector<16x128xf32>
    %54 = arith.mulf %17, %53 : vector<16x128xf32>
    %c0_22 = arith.constant 0 : index
    %c0_23 = arith.constant 0 : index
    %55 = vector.load %arg4[%c0_22, %c0_23] : memref<128x32xf32, #tpu.memory_space<vmem>>, vector<128x32xf32>
    %cst_24 = arith.constant dense<0.000000e+00> : vector<16x32xf32>
    %56 = tpu.matmul %54, %55, %cst_24 {dimension_numbers = #tpu.dot_dimension_numbers<[1], [0], [0], [1], [0, 0, 1, 1], [], []>} : vector<16x128xf32>, vector<128x32xf32>, vector<16x32xf32> -> vector<16x32xf32>
    %57 = arith.addf %0, %56 : vector<16x32xf32>
    %c0_25 = arith.constant 0 : index
    %c0_26 = arith.constant 0 : index
    %58 = vector.load %arg5[%c0_25, %c0_26] : memref<16x32xf32, #tpu.memory_space<vmem>>, vector<16x32xf32>
    tpu.vector_store %arg5[%c0_25, %c0_26], %57 {strides = array<i32>} : memref<16x32xf32, #tpu.memory_space<vmem>>, vector<16x32xf32>,
    return
  }
  func.func @transform_0(%arg0: i32) -> (i32, i32) {
    %c0_i32 = arith.constant 0 : i32
    %c0_i32_0 = arith.constant 0 : i32
    return %arg0, %c0_i32 : i32, i32
  }
  func.func @transform_1(%arg0: i32) -> (i32, i32) {
    %c0_i32 = arith.constant 0 : i32
    %c0_i32_0 = arith.constant 0 : i32
    %c0_i32_1 = arith.constant 0 : i32
    return %c0_i32, %c0_i32_0 : i32, i32
  }
  func.func @transform_2(%arg0: i32) -> (i32, i32) {
    %c0_i32 = arith.constant 0 : i32
    %c0_i32_0 = arith.constant 0 : i32
    %c0_i32_1 = arith.constant 0 : i32
    return %c0_i32, %c0_i32_0 : i32, i32
  }
  func.func @transform_3(%arg0: i32) -> (i32, i32) {
    %c0_i32 = arith.constant 0 : i32
    %c0_i32_0 = arith.constant 0 : i32
    %c0_i32_1 = arith.constant 0 : i32
    return %c0_i32, %c0_i32_0 : i32, i32
  }
  func.func @transform_4(%arg0: i32) -> (i32, i32) {
    %c0_i32 = arith.constant 0 : i32
    %c0_i32_0 = arith.constant 0 : i32
    return %arg0, %c0_i32 : i32, i32
  }
}

</mosaic_0001>

<llo_original>
// kernel: tpu_custom_call.1
$region0: #{tpu_custom_call.1}
  #allocation0 [shape = 'u32[]', space=smem, size = 0x4, offset = 0x4, fixed_abs, tag = 'smem constant byte address 0x4 - core index']
  #allocation1 [shape = 'u32[72,128]{1,0:T(1,128)}', space=vmem, size = 0x9000, scoped, tag = 'internal scratch']
  %s0 = inlined_call_operand.vmem [shape: f32[16,32], index: 0, kind: input, shape index: {}]
  %s1 = inlined_call_operand.vmem [shape: f32[1,32], index: 1, kind: input, shape index: {}]
  %s2 = inlined_call_operand.vmem [shape: f32[32,128], index: 2, kind: input, shape index: {}]
  %s3 = inlined_call_operand.vmem [shape: f32[128,32], index: 3, kind: input, shape index: {}]
  %s4 = inlined_call_operand.hbm [shape: f32[16,32], index: 4, kind: output, shape index: {}]
  %s5 = sld [smem:[#allocation0]]
  $region26: #{tpu_custom_call.1} parent=0
    _
  %s7 = ssub.s32 1, %s5
  %s8 = scalar_select 0, %s7, %s5
  $region1: #{tpu_custom_call.1} parent=0
    #allocation2 [shape = 'u8[8192]{0}', space=vmem, size = 0x2000, scoped, tag = 'output window, operand 0, single buffered']
    #allocation3 [shape = 's32[1]{0}', space=sflag, size = 0x4, scoped, tag = 'scoped memory for tpu_custom_call.1']
    %9 = vsyncpa [#allocation3], 0
    // Predicated region
    $region2: #{tpu_custom_call.1} parent=1 // pred_check
      _
    $region3: #{tpu_custom_call.1} parent=1 // pred_check_branch
      %11 = sbr.rel (0) target = $region5
    $region4: #{tpu_custom_call.1} parent=1 // pred_region
      _
    $region5: #{tpu_custom_call.1} parent=1 // pred_fallthru
      _
    // Predicated region
    $region6: #{tpu_custom_call.1} parent=1 // pred_check
      _
    $region7: #{tpu_custom_call.1} parent=1 // pred_check_branch
      %13 = sbr.rel (0) target = $region9
    $region8: #{tpu_custom_call.1} parent=1 // pred_region
      _
    $region9: #{tpu_custom_call.1} parent=1 // pred_fallthru
      _
    // Predicated region
    $region10: #{tpu_custom_call.1} parent=1 // pred_check
      _
    $region11: #{tpu_custom_call.1} parent=1 // pred_check_branch
      %15 = sbr.rel (0) target = $region13
    $region12: #{tpu_custom_call.1} parent=1 // pred_region
      _
    $region13: #{tpu_custom_call.1} parent=1 // pred_fallthru
      _
    // Predicated region
    $region14: #{tpu_custom_call.1} parent=1 // pred_check
      _
    $region15: #{tpu_custom_call.1} parent=1 // pred_check_branch
      %17 = sbr.rel (0) target = $region17
    $region16: #{tpu_custom_call.1} parent=1 // pred_region
      _
    $region17: #{tpu_custom_call.1} parent=1 // pred_fallthru
      _
    %v18 = vld [vmem:[%s0] sm:$0xff]
    %v19 = vld [vmem:[%s0 + $0x8] sm:$0xff]
    %v20 = vmul.f32 %v18, %v18
    %v21 = vmul.f32 %v19, %v19
    %vm22 = vcmask 261120
    %v23 = vsel %vm22, %v20, 0.0
    %24 = vadd.xlane.f32.xlu0 %v23
    %v25 = vpop.xlane.xlu0 %24
    %v26 = vsel %vm22, %v21, 0.0
    %27 = vadd.xlane.f32.xlu0 %v26
    %v28 = vpop.xlane.xlu0 %27
    %v29 = vrcp.pop 32.0
    %v30 = vmul.f32 32.0, %v29
    %v31 = vsub.f32 1.0, %v30
    %v32 = vmul.f32 %v29, %v31
    %v33 = vadd.f32 %v29, %v32
    %vm34 = vweird.f32 %v29
    %v35 = vsel %vm34, %v29, %v33
    %v36 = vmul.f32 %v25, %v35
    %v37 = vmul.f32 %v28, %v35
    %v38 = vadd.f32 %v36, 1e-05
    %v39 = vadd.f32 %v37, 1e-05
    %v40 = vrsqrt.pop %v38
    %v41 = vmul.f32 %v40, %v38
    %v42 = vmul.f32 %v41, %v40
    %v43 = vmul.f32 0.5, %v42
    %v44 = vsub.f32 1.5, %v43
    %v45 = vmul.f32 %v40, %v44
    %vm46 = vweird.f32 %v38
    %vm47 = vweird.f32 %v40
    %vm48 = vmor %vm46, %vm47
    %v49 = vsel %vm48, %v40, %v45
    %v50 = vrsqrt.pop %v39
    %v51 = vmul.f32 %v50, %v39
    %v52 = vmul.f32 %v51, %v50
    %v53 = vmul.f32 0.5, %v52
    %v54 = vsub.f32 1.5, %v53
    %v55 = vmul.f32 %v50, %v54
    %vm56 = vweird.f32 %v39
    %vm57 = vweird.f32 %v50
    %vm58 = vmor %vm56, %vm57
    %v59 = vsel %vm58, %v50, %v55
    %v60 = vmul.f32 %v18, %v49
    %v61 = vmul.f32 %v19, %v59
    %v62 = vld [vmem:[%s1] sm:$0x1]
    %v64 = vperm.slane %v62, 0
    %v66 = vmul.f32 %v60, %v64
    %v67 = vmul.f32 %v61, %v64
    %v68 = vld [vmem:[%s2] sm:$0xff]
    %v69 = vld [vmem:[%s2 + $0x8] sm:$0xff]
    %v70 = vld [vmem:[%s2 + $0x10] sm:$0xff]
    %v71 = vld [vmem:[%s2 + $0x18] sm:$0xff]
    %v73 = vsel %vm22, %v66, 0
    %v76 = vsel %vm22, %v67, 0
    %78 = vmatpush.msra.mxu0 0.0
    %79 = vmatpush.msra.mxu0 0.0
    %80 = vmatpush.msra.mxu0 0.0
    %81 = vmatpush.msra.mxu0 0.0
    %82 = vmatpush.msra.mxu0 0.0
    %83 = vmatpush.msra.mxu0 0.0
    %84 = vmatpush.msra.mxu0 0.0
    %85 = vmatpush.msra.mxu0 0.0
    %86 = vmatpush.msra.mxu0 0.0
    %87 = vmatpush.msra.mxu0 0.0
    %88 = vmatpush.msra.mxu0 0.0
    %89 = vmatpush.msra.mxu0 0.0
    %90 = vmatpush.msra.mxu0 %v71
    %91 = vmatpush.msra.mxu0 %v70
    %92 = vmatpush.msra.mxu0 %v69
    %93 = vmatpush.msra.mxu0 %v68
    %94 = vmatmul.f32.gmra.mxu0 %v73
    %v95 = vpop.f32.mrf.mxu0
    %v96 = vadd.f32 0.0, %v95
    %97 = vmatmul.f32.gmra.mxu0 %v76
    %v98 = vpop.f32.mrf.mxu0
    %v99 = vadd.f32 0.0, %v98
    %100 = vdwg.mxu0
    %v101 = vmul.f32 %v96, 0.5
    %v102 = vmul.f32 %v99, 0.5
    %v103 = vmul.f32 %v96, 0.70710677
    %v104 = vmul.f32 %v99, 0.70710677
    %v105 = vand.u32 2147483647, %v103
    %v106 = vand.u32 2147483647, %v104
    %v107 = vmul.f32 %v105, 0.3275911
    %v108 = vmul.f32 %v106, 0.3275911
    %v109 = vadd.f32 %v107, 1.0
    %v110 = vadd.f32 %v108, 1.0
    %v111 = vrcp.pop %v109
    %v112 = vrcp.pop %v110
    %v113 = vmul.f32 %v111, 1.0614054
    %v114 = vmul.f32 %v112, 1.0614054
    %v115 = vadd.f32 %v113, -1.4531521
    %v116 = vadd.f32 %v114, -1.4531521
    %v117 = vmul.f32 %v115, %v111
    %v118 = vmul.f32 %v116, %v112
    %v119 = vadd.f32 %v117, 1.4214138
    %v120 = vadd.f32 %v118, 1.4214138
    %v121 = vmul.f32 %v119, %v111
    %v122 = vmul.f32 %v120, %v112
    %v123 = vadd.f32 %v121, -0.28449672
    %v124 = vadd.f32 %v122, -0.28449672
    %v125 = vmul.f32 %v123, %v111
    %v126 = vmul.f32 %v124, %v112
    %v127 = vadd.f32 %v125, 0.2548296
    %v128 = vadd.f32 %v126, 0.2548296
    %v129 = vmul.f32 %v127, %v111
    %v130 = vmul.f32 %v128, %v112
    %v131 = vsub.f32 0.0, %v105
    %v132 = vsub.f32 0.0, %v106
    %v133 = vmul.f32 %v131, %v105
    %v134 = vmul.f32 %v132, %v106
    %v135 = vmul.f32 %v133, 1.442695
    %v136 = vpow.pop %v135
    %v137 = vmul.f32 %v134, 1.442695
    %v138 = vpow.pop %v137
    %v139 = vmul.f32 %v129, %v136
    %v140 = vmul.f32 %v130, %v138
    %v141 = vsub.f32 1.0, %v139
    %v142 = vsub.f32 1.0, %v140
    %vm143 = vcmp.lt.f32.partialorder %v103, 0.0
    %vm144 = vcmp.lt.f32.partialorder %v104, 0.0
    %v145 = vsub.f32 0.0, %v141
    %v146 = vsub.f32 0.0, %v142
    %v147 = vsel %vm143, %v145, %v141
    %v148 = vsel %vm144, %v146, %v142
    %v149 = vadd.f32 %v147, 1.0
    %v150 = vadd.f32 %v148, 1.0
    %v151 = vmul.f32 %v101, %v149
    %v152 = vmul.f32 %v102, %v150
    %v153 = vld [vmem:[%s3] sm:$0xff]
    %v154 = vld [vmem:[%s3 + $0x8] sm:$0xff]
    %v155 = vld [vmem:[%s3 + $0x10] sm:$0xff]
    %v156 = vld [vmem:[%s3 + $0x18] sm:$0xff]
    %v157 = vld [vmem:[%s3 + $0x20] sm:$0xff]
    %v158 = vld [vmem:[%s3 + $0x28] sm:$0xff]
    %v159 = vld [vmem:[%s3 + $0x30] sm:$0xff]
    %v160 = vld [vmem:[%s3 + $0x38] sm:$0xff]
    %v161 = vld [vmem:[%s3 + $0x40] sm:$0xff]
    %v162 = vld [vmem:[%s3 + $0x48] sm:$0xff]
    %v163 = vld [vmem:[%s3 + $0x50] sm:$0xff]
    %v164 = vld [vmem:[%s3 + $0x58] sm:$0xff]
    %v165 = vld [vmem:[%s3 + $0x60] sm:$0xff]
    %v166 = vld [vmem:[%s3 + $0x68] sm:$0xff]
    %v167 = vld [vmem:[%s3 + $0x70] sm:$0xff]
    %v168 = vld [vmem:[%s3 + $0x78] sm:$0xff]
    %169 = vmatpush.msra.mxu0 %v168
    %170 = vmatpush.msra.mxu0 %v167
    %171 = vmatpush.msra.mxu0 %v166
    %172 = vmatpush.msra.mxu0 %v165
    %173 = vmatpush.msra.mxu0 %v164
    %174 = vmatpush.msra.mxu0 %v163
    %175 = vmatpush.msra.mxu0 %v162
    %176 = vmatpush.msra.mxu0 %v161
    %177 = vmatpush.msra.mxu0 %v160
    %178 = vmatpush.msra.mxu0 %v159
    %179 = vmatpush.msra.mxu0 %v158
    %180 = vmatpush.msra.mxu0 %v157
    %181 = vmatpush.msra.mxu0 %v156
    %182 = vmatpush.msra.mxu0 %v155
    %183 = vmatpush.msra.mxu0 %v154
    %184 = vmatpush.msra.mxu0 %v153
    %185 = vmatmul.f32.gmra.mxu0 %v151
    %v186 = vpop.f32.mrf.mxu0
    %v187 = vadd.f32 0.0, %v186
    %188 = vmatmul.f32.gmra.mxu0 %v152
    %v189 = vpop.f32.mrf.mxu0
    %v190 = vadd.f32 0.0, %v189
    %191 = vdwg.mxu0
    %v192 = vadd.f32 %v18, %v187
    %v193 = vadd.f32 %v19, %v190
    %194 = vst.msk [vmem:[#allocation2] sm:$0xff] %vm22, %v192
    %195 = vst.msk [vmem:[#allocation2 + $0x8] sm:$0xff] %vm22, %v193
    // Predicated region
    $region18: #{tpu_custom_call.1} parent=1 // pred_check
      _
    $region19: #{tpu_custom_call.1} parent=1 // pred_check_branch
      %197 = sbr.rel (0) target = $region21
    $region20: #{tpu_custom_call.1} parent=1 // pred_region
      %199 = vsyncadd [#allocation3], 0
      %s200 = sshll.u32 [#allocation2], 4
      %s201 = int_to_ptr.vmem [resolvable:$true] %s200
      %s202 = sshll.u32 %s4, 4
      %s203 = int_to_ptr.hbm [resolvable:$true] %s202
      %208 = dma.vmem_to_hbm [thread:$0]  %s201, 256, %s203, [#allocation3], 128, 128, 8
    $region21: #{tpu_custom_call.1} parent=1 // pred_fallthru
      _
    // Predicated region
    $region22: #{tpu_custom_call.1} parent=1 // pred_check
      _
    $region23: #{tpu_custom_call.1} parent=1 // pred_check_branch
      %210 = sbr.rel (0) target = $region25
    $region24: #{tpu_custom_call.1} parent=1 // pred_region
      %212 = dma.done [#allocation3], 256
    $region25: #{tpu_custom_call.1} parent=1 // pred_fallthru
      _
    %213 = vsyncpa [#allocation3], 1

// kernel: tpu_custom_call.1
$region0: #{tpu_custom_call.1}
  #allocation0 [shape = 'u32[]', space=smem, size = 0x4, offset = 0x4, fixed_abs, tag = 'smem constant byte address 0x4 - core index']
  #allocation1 [shape = 'u32[72,128]{1,0:T(1,128)}', space=vmem, size = 0x9000, scoped, tag = 'internal scratch']
  %s0 = inlined_call_operand.vmem [shape: f32[16,32], index: 0, kind: input, shape index: {}]
  %s1 = inlined_call_operand.vmem [shape: f32[1,32], index: 1, kind: input, shape index: {}]
  %s2 = inlined_call_operand.vmem [shape: f32[32,128], index: 2, kind: input, shape index: {}]
  %s3 = inlined_call_operand.vmem [shape: f32[128,32], index: 3, kind: input, shape index: {}]
  %s4 = inlined_call_operand.hbm [shape: f32[16,32], index: 4, kind: output, shape index: {}]
  %s5 = sld [smem:[#allocation0]]
  $region26: #{tpu_custom_call.1} parent=0
    _
  %s7 = ssub.s32 1, %s5
  %s8 = scalar_select 0, %s7, %s5
  $region1: #{tpu_custom_call.1} parent=0
    #allocation2 [shape = 'u8[8192]{0}', space=vmem, size = 0x2000, scoped, tag = 'output window, operand 0, single buffered']
    #allocation3 [shape = 's32[1]{0}', space=sflag, size = 0x4, scoped, tag = 'scoped memory for tpu_custom_call.1']
    %9 = vsyncpa [#allocation3], 0
    // Predicated region
    $region2: #{tpu_custom_call.1} parent=1 // pred_check
      _
    $region3: #{tpu_custom_call.1} parent=1 // pred_check_branch
      %11 = sbr.rel (0) target = $region5
    $region4: #{tpu_custom_call.1} parent=1 // pred_region
      _
    $region5: #{tpu_custom_call.1} parent=1 // pred_fallthru
      _
    // Predicated region
    $region6: #{tpu_custom_call.1} parent=1 // pred_check
      _
    $region7: #{tpu_custom_call.1} parent=1 // pred_check_branch
      %13 = sbr.rel (0) target = $region9
    $region8: #{tpu_custom_call.1} parent=1 // pred_region
      _
    $region9: #{tpu_custom_call.1} parent=1 // pred_fallthru
      _
    // Predicated region
    $region10: #{tpu_custom_call.1} parent=1 // pred_check
      _
    $region11: #{tpu_custom_call.1} parent=1 // pred_check_branch
      %15 = sbr.rel (0) target = $region13
    $region12: #{tpu_custom_call.1} parent=1 // pred_region
      _
    $region13: #{tpu_custom_call.1} parent=1 // pred_fallthru
      _
    // Predicated region
    $region14: #{tpu_custom_call.1} parent=1 // pred_check
      _
    $region15: #{tpu_custom_call.1} parent=1 // pred_check_branch
      %17 = sbr.rel (0) target = $region17
    $region16: #{tpu_custom_call.1} parent=1 // pred_region
      _
    $region17: #{tpu_custom_call.1} parent=1 // pred_fallthru
      _
    %v18 = vld [vmem:[%s0] sm:$0xff]
    %v19 = vld [vmem:[%s0 + $0x8] sm:$0xff]
    %v20 = vmul.f32 %v18, %v18
    %v21 = vmul.f32 %v19, %v19
    %vm22 = vcmask 261120
    %v23 = vsel %vm22, %v20, 0.0
    %24 = vadd.xlane.f32.xlu0 %v23
    %v25 = vpop.xlane.xlu0 %24
    %v26 = vsel %vm22, %v21, 0.0
    %27 = vadd.xlane.f32.xlu0 %v26
    %v28 = vpop.xlane.xlu0 %27
    %v29 = vrcp.pop 32.0
    %v30 = vmul.f32 32.0, %v29
    %v31 = vsub.f32 1.0, %v30
    %v32 = vmul.f32 %v29, %v31
    %v33 = vadd.f32 %v29, %v32
    %vm34 = vweird.f32 %v29
    %v35 = vsel %vm34, %v29, %v33
    %v36 = vmul.f32 %v25, %v35
    %v37 = vmul.f32 %v28, %v35
    %v38 = vadd.f32 %v36, 1e-05
    %v39 = vadd.f32 %v37, 1e-05
    %v40 = vrsqrt.pop %v38
    %v41 = vmul.f32 %v40, %v38
    %v42 = vmul.f32 %v41, %v40
    %v43 = vmul.f32 0.5, %v42
    %v44 = vsub.f32 1.5, %v43
    %v45 = vmul.f32 %v40, %v44
    %vm46 = vweird.f32 %v38
    %vm47 = vweird.f32 %v40
    %vm48 = vmor %vm46, %vm47
    %v49 = vsel %vm48, %v40, %v45
    %v50 = vrsqrt.pop %v39
    %v51 = vmul.f32 %v50, %v39
    %v52 = vmul.f32 %v51, %v50
    %v53 = vmul.f32 0.5, %v52
    %v54 = vsub.f32 1.5, %v53
    %v55 = vmul.f32 %v50, %v54
    %vm56 = vweird.f32 %v39
    %vm57 = vweird.f32 %v50
    %vm58 = vmor %vm56, %vm57
    %v59 = vsel %vm58, %v50, %v55
    %v60 = vmul.f32 %v18, %v49
    %v61 = vmul.f32 %v19, %v59
    %v62 = vld [vmem:[%s1] sm:$0x1]
    %v64 = vperm.slane %v62, 0
    %v66 = vmul.f32 %v60, %v64
    %v67 = vmul.f32 %v61, %v64
    %v68 = vld [vmem:[%s2] sm:$0xff]
    %v69 = vld [vmem:[%s2 + $0x8] sm:$0xff]
    %v70 = vld [vmem:[%s2 + $0x10] sm:$0xff]
    %v71 = vld [vmem:[%s2 + $0x18] sm:$0xff]
    %v73 = vsel %vm22, %v66, 0
    %v76 = vsel %vm22, %v67, 0
    %78 = vmatpush.msra.mxu0 0.0
    %79 = vmatpush.msra.mxu0 0.0
    %80 = vmatpush.msra.mxu0 0.0
    %81 = vmatpush.msra.mxu0 0.0
    %82 = vmatpush.msra.mxu0 0.0
    %83 = vmatpush.msra.mxu0 0.0
    %84 = vmatpush.msra.mxu0 0.0
    %85 = vmatpush.msra.mxu0 0.0
    %86 = vmatpush.msra.mxu0 0.0
    %87 = vmatpush.msra.mxu0 0.0
    %88 = vmatpush.msra.mxu0 0.0
    %89 = vmatpush.msra.mxu0 0.0
    %90 = vmatpush.msra.mxu0 %v71
    %91 = vmatpush.msra.mxu0 %v70
    %92 = vmatpush.msra.mxu0 %v69
    %93 = vmatpush.msra.mxu0 %v68
    %94 = vmatmul.f32.gmra.mxu0 %v73
    %v95 = vpop.f32.mrf.mxu0
    %v96 = vadd.f32 0.0, %v95
    %97 = vmatmul.f32.gmra.mxu0 %v76
    %v98 = vpop.f32.mrf.mxu0
    %v99 = vadd.f32 0.0, %v98
    %100 = vdwg.mxu0
    %v101 = vmul.f32 %v96, 0.5
    %v102 = vmul.f32 %v99, 0.5
    %v103 = vmul.f32 %v96, 0.70710677
    %v104 = vmul.f32 %v99, 0.70710677
    %v105 = vand.u32 2147483647, %v103
    %v106 = vand.u32 2147483647, %v104
    %v107 = vmul.f32 %v105, 0.3275911
    %v108 = vmul.f32 %v106, 0.3275911
    %v109 = vadd.f32 %v107, 1.0
    %v110 = vadd.f32 %v108, 1.0
    %v111 = vrcp.pop %v109
    %v112 = vrcp.pop %v110
    %v113 = vmul.f32 %v111, 1.0614054
    %v114 = vmul.f32 %v112, 1.0614054
    %v115 = vadd.f32 %v113, -1.4531521
    %v116 = vadd.f32 %v114, -1.4531521
    %v117 = vmul.f32 %v115, %v111
    %v118 = vmul.f32 %v116, %v112
    %v119 = vadd.f32 %v117, 1.4214138
    %v120 = vadd.f32 %v118, 1.4214138
    %v121 = vmul.f32 %v119, %v111
    %v122 = vmul.f32 %v120, %v112
    %v123 = vadd.f32 %v121, -0.28449672
    %v124 = vadd.f32 %v122, -0.28449672
    %v125 = vmul.f32 %v123, %v111
    %v126 = vmul.f32 %v124, %v112
    %v127 = vadd.f32 %v125, 0.2548296
    %v128 = vadd.f32 %v126, 0.2548296
    %v129 = vmul.f32 %v127, %v111
    %v130 = vmul.f32 %v128, %v112
    %v131 = vsub.f32 0.0, %v105
    %v132 = vsub.f32 0.0, %v106
    %v133 = vmul.f32 %v131, %v105
    %v134 = vmul.f32 %v132, %v106
    %v135 = vmul.f32 %v133, 1.442695
    %v136 = vpow.pop %v135
    %v137 = vmul.f32 %v134, 1.442695
    %v138 = vpow.pop %v137
    %v139 = vmul.f32 %v129, %v136
    %v140 = vmul.f32 %v130, %v138
    %v141 = vsub.f32 1.0, %v139
    %v142 = vsub.f32 1.0, %v140
    %vm143 = vcmp.lt.f32.partialorder %v103, 0.0
    %vm144 = vcmp.lt.f32.partialorder %v104, 0.0
    %v145 = vsub.f32 0.0, %v141
    %v146 = vsub.f32 0.0, %v142
    %v147 = vsel %vm143, %v145, %v141
    %v148 = vsel %vm144, %v146, %v142
    %v149 = vadd.f32 %v147, 1.0
    %v150 = vadd.f32 %v148, 1.0
    %v151 = vmul.f32 %v101, %v149
    %v152 = vmul.f32 %v102, %v150
    %v153 = vld [vmem:[%s3] sm:$0xff]
    %v154 = vld [vmem:[%s3 + $0x8] sm:$0xff]
    %v155 = vld [vmem:[%s3 + $0x10] sm:$0xff]
    %v156 = vld [vmem:[%s3 + $0x18] sm:$0xff]
    %v157 = vld [vmem:[%s3 + $0x20] sm:$0xff]
    %v158 = vld [vmem:[%s3 + $0x28] sm:$0xff]
    %v159 = vld [vmem:[%s3 + $0x30] sm:$0xff]
    %v160 = vld [vmem:[%s3 + $0x38] sm:$0xff]
    %v161 = vld [vmem:[%s3 + $0x40] sm:$0xff]
    %v162 = vld [vmem:[%s3 + $0x48] sm:$0xff]
    %v163 = vld [vmem:[%s3 + $0x50] sm:$0xff]
    %v164 = vld [vmem:[%s3 + $0x58] sm:$0xff]
    %v165 = vld [vmem:[%s3 + $0x60] sm:$0xff]
    %v166 = vld [vmem:[%s3 + $0x68] sm:$0xff]
    %v167 = vld [vmem:[%s3 + $0x70] sm:$0xff]
    %v168 = vld [vmem:[%s3 + $0x78] sm:$0xff]
    %169 = vmatpush.msra.mxu0 %v168
    %170 = vmatpush.msra.mxu0 %v167
    %171 = vmatpush.msra.mxu0 %v166
    %172 = vmatpush.msra.mxu0 %v165
    %173 = vmatpush.msra.mxu0 %v164
    %174 = vmatpush.msra.mxu0 %v163
    %175 = vmatpush.msra.mxu0 %v162
    %176 = vmatpush.msra.mxu0 %v161
    %177 = vmatpush.msra.mxu0 %v160
    %178 = vmatpush.msra.mxu0 %v159
    %179 = vmatpush.msra.mxu0 %v158
    %180 = vmatpush.msra.mxu0 %v157
    %181 = vmatpush.msra.mxu0 %v156
    %182 = vmatpush.msra.mxu0 %v155
    %183 = vmatpush.msra.mxu0 %v154
    %184 = vmatpush.msra.mxu0 %v153
    %185 = vmatmul.f32.gmra.mxu0 %v151
    %v186 = vpop.f32.mrf.mxu0
    %v187 = vadd.f32 0.0, %v186
    %188 = vmatmul.f32.gmra.mxu0 %v152
    %v189 = vpop.f32.mrf.mxu0
    %v190 = vadd.f32 0.0, %v189
    %191 = vdwg.mxu0
    %v192 = vadd.f32 %v18, %v187
    %v193 = vadd.f32 %v19, %v190
    %194 = vst.msk [vmem:[#allocation2] sm:$0xff] %vm22, %v192
    %195 = vst.msk [vmem:[#allocation2 + $0x8] sm:$0xff] %vm22, %v193
    // Predicated region
    $region18: #{tpu_custom_call.1} parent=1 // pred_check
      _
    $region19: #{tpu_custom_call.1} parent=1 // pred_check_branch
      %197 = sbr.rel (0) target = $region21
    $region20: #{tpu_custom_call.1} parent=1 // pred_region
      %199 = vsyncadd [#allocation3], 0
      %s200 = sshll.u32 [#allocation2], 4
      %s201 = int_to_ptr.vmem [resolvable:$true] %s200
      %s202 = sshll.u32 %s4, 4
      %s203 = int_to_ptr.hbm [resolvable:$true] %s202
      %208 = dma.vmem_to_hbm [thread:$0]  %s201, 256, %s203, [#allocation3], 128, 128, 8
    $region21: #{tpu_custom_call.1} parent=1 // pred_fallthru
      _
    // Predicated region
    $region22: #{tpu_custom_call.1} parent=1 // pred_check
      _
    $region23: #{tpu_custom_call.1} parent=1 // pred_check_branch
      %210 = sbr.rel (0) target = $region25
    $region24: #{tpu_custom_call.1} parent=1 // pred_region
      %212 = dma.done [#allocation3], 256
    $region25: #{tpu_custom_call.1} parent=1 // pred_fallthru
      _
    %213 = vsyncpa [#allocation3], 1

</llo_original>
